<compile_context>
chip_gen: v5e
topology: v5e:2x2
jax: 0.10.0
libtpu: 0.0.40
codegen_flags: <defaults>
</compile_context>

<pallas_src>
import functools

import jax
import jax.numpy as jnp
from jax.experimental import pallas as pl
from jax.experimental.pallas import tpu as pltpu


def _round_up(x, m):
    return (x + m - 1) // m * m


# ---------------------------------------------------------------------------
# Pallas kernels.
# ---------------------------------------------------------------------------
def _proj_kernel_single_k(p_ref, w_ref, o_ref):
    # p_ref: (TM, Kp) bf16, w_ref: (Kp, Np) bf16 resident, o_ref: (TM, Np) f32.
    o_ref[...] = jnp.dot(
        p_ref[...], w_ref[...], preferred_element_type=jnp.float32
    ).astype(o_ref.dtype)


def _proj_kernel_multi_k(p_ref, w_ref, o_ref, acc_ref):
    # K-tiled: accumulate in f32 scratch, write once on the last K step.
    @pl.when(pl.program_id(1) == 0)
    def _():
        acc_ref[...] = jnp.zeros_like(acc_ref)

    acc_ref[...] += jnp.dot(
        p_ref[...], w_ref[...], preferred_element_type=jnp.float32
    )

    @pl.when(pl.program_id(1) == pl.num_programs(1) - 1)
    def _():
        o_ref[...] = acc_ref[...].astype(o_ref.dtype)


def _patch_proj(patches, w_mat, *, tm_max=512, tk_max=2048):
    """patches: (M, K) f32, w_mat: (K, N) f32 -> (M, N) f32 via the MXU."""
    M, K = patches.shape
    K2, N = w_mat.shape
    assert K == K2

    SUBLANE, LANE = 16, 128            # bf16 sublane packing; lane width
    kp = _round_up(K, LANE)            # lane-dense K
    np_ = _round_up(N, LANE)           # lane-dense N (pads small embed_dim to 128)
    tm = min(tm_max, _round_up(M, SUBLANE))
    mp = _round_up(M, tm)              # whole number of M tiles (no ragged tile)

    # Tile K only if the padded weight would not comfortably stay resident.
    tk = kp if kp <= tk_max else tk_max
    kpp = _round_up(kp, tk)
    kt = kpp // tk

    # Zero-pad (padded K rows/cols contribute nothing; padded M/N sliced off).
    p_pad = jnp.zeros((mp, kpp), jnp.bfloat16).at[:M, :K].set(
        patches.astype(jnp.bfloat16))
    w_pad = jnp.zeros((kpp, np_), jnp.bfloat16).at[:K, :N].set(
        w_mat.astype(jnp.bfloat16))

    bpe_in, bpe_out = 2, 4
    cost = pl.CostEstimate(
        flops=2 * mp * kpp * np_,
        transcendentals=0,
        bytes_accessed=bpe_in * (mp * kpp + kpp * np_) + bpe_out * mp * np_,
    )

    if kt == 1:
        grid = (mp // tm,)
        in_specs = [
            pl.BlockSpec((tm, kpp), lambda i: (i, 0)),    # pipelined P tiles
            pl.BlockSpec((kpp, np_), lambda i: (0, 0)),   # weight resident
        ]
        out_specs = pl.BlockSpec((tm, np_), lambda i: (i, 0))
        scratch_shapes = []
        kernel = _proj_kernel_single_k
        dim_sem = ("parallel",)
        vmem_bytes = 2 * (tm * kpp * bpe_in + kpp * np_ * bpe_in
                          + tm * np_ * bpe_out)
    else:
        grid = (mp // tm, kt)
        in_specs = [
            pl.BlockSpec((tm, tk), lambda i, k: (i, k)),
            pl.BlockSpec((tk, np_), lambda i, k: (k, 0)),
        ]
        out_specs = pl.BlockSpec((tm, np_), lambda i, k: (i, 0))
        scratch_shapes = [pltpu.VMEM((tm, np_), jnp.float32)]
        kernel = _proj_kernel_multi_k
        dim_sem = ("parallel", "arbitrary")
        vmem_bytes = (2 * (tm * tk * bpe_in + tk * np_ * bpe_in
                           + tm * np_ * bpe_out)
                      + tm * np_ * 4)

    vmem_limit = int(min(max(2 * vmem_bytes, 16 << 20), 64 << 20))

    out = pl.pallas_call(
        kernel,
        out_shape=jax.ShapeDtypeStruct((mp, np_), jnp.float32),
        grid_spec=pltpu.PrefetchScalarGridSpec(
            num_scalar_prefetch=0,
            grid=grid,
            in_specs=in_specs,
            out_specs=out_specs,
            scratch_shapes=scratch_shapes,
        ),
        compiler_params=pltpu.CompilerParams(
            dimension_semantics=dim_sem,
            vmem_limit_bytes=vmem_limit,
        ),
        cost_estimate=cost,
    )(p_pad, w_pad)
    return out[:M, :N]


# ---------------------------------------------------------------------------
# PatchEmbedding forward (glue in plain JAX, projection in Pallas).
# ---------------------------------------------------------------------------
@functools.partial(jax.jit, static_argnames=("patch_size",))
def patch_embedding_forward(x, proj_weight, *, patch_size):
    """
    x:           (B, C, H, W)            -- NCHW, like the PyTorch module
    proj_weight: (embed_dim, C, p, p)    -- nn.Conv2d weight layout, bias=False
    returns:     (B, num_patches, embed_dim)
    """
    B, C, H, W = x.shape
    E = proj_weight.shape[0]
    p = patch_size
    if H % p != 0 or W % p != 0:
        raise ValueError("image dimensions must be divisible by the patch size")
    gh, gw = H // p, W // p
    num_patches = gh * gw

    # NCHW -> patch matrix (B*num_patches, C*p*p), features ordered (C, ph, pw)
    # to match PyTorch Conv2d weight flattening.
    patches = x.reshape(B, C, gh, p, gw, p)
    patches = jnp.transpose(patches, (0, 2, 4, 1, 3, 5))
    patches = patches.reshape(B * num_patches, C * p * p)

    # Conv2d weight (E, C, p, p) -> (C*p*p, E).
    w_mat = proj_weight.reshape(E, C * p * p).T

    out = _patch_proj(patches, w_mat)                 # (B*num_patches, E) f32
    return out.reshape(B, num_patches, E)


# ---------------------------------------------------------------------------
# Pure-JAX reference (XLA conv, f32) for a correctness check.
# ---------------------------------------------------------------------------
def patch_embedding_reference(x, proj_weight, *, patch_size):
    y = jax.lax.conv_general_dilated(
        x, proj_weight,
        window_strides=(patch_size, patch_size),
        padding="VALID",
        dimension_numbers=("NCHW", "OIHW", "NCHW"),
    )  # (B, E, gh, gw)
    B, E, gh, gw = y.shape
    return jnp.transpose(y.reshape(B, E, gh * gw), (0, 2, 1))


if __name__ == "__main__":
    # Small shapes consistent with the module.
    B, C, H, W = 2, 4, 16, 16
    patch_size = 4
    embed_dim = 32

    key = jax.random.PRNGKey(0)
    kx, kw = jax.random.split(key)
    x = jax.random.normal(kx, (B, C, H, W), dtype=jnp.float32)
    proj_weight = jax.random.normal(
        kw, (embed_dim, C, patch_size, patch_size), dtype=jnp.float32
    ) * (1.0 / (C * patch_size * patch_size) ** 0.5)

    out = patch_embedding_forward(x, proj_weight, patch_size=patch_size)
    out = jax.block_until_ready(out)

    ref = patch_embedding_reference(x, proj_weight, patch_size=patch_size)
    assert out.shape == (B, (H // patch_size) * (W // patch_size), embed_dim)
    # bf16 MXU inputs with f32 accumulation -> relaxed tolerance vs f32 conv.
    assert jnp.allclose(out, ref, atol=5e-2, rtol=5e-2), "mismatch vs reference"

    print("KERNEL_OK")
</pallas_src>

<mosaic_0001>
module attributes {stable_mosaic.version = 11 : i64} {
  func.func @_proj_kernel_single_k(%arg0: i32, %arg1: memref<32x128xbf16, #tpu.memory_space<vmem>>, %arg2: memref<128x128xbf16, #tpu.memory_space<vmem>>, %arg3: memref<32x128xf32, #tpu.memory_space<vmem>>) attributes {dimension_semantics = [#tpu.dimension_semantics<parallel>], iteration_bounds = array<i64: 1>, scalar_prefetch = 0 : i64, scratch_operands = 0 : i64, tpu.core_type = #tpu.core_type<tc>, window_params = [{transform_indices = @transform_0, window_bounds = array<i64: 32, 128>}, {pipeline_mode = #tpu.pipeline_mode<synchronous>, transform_indices = @transform_1, window_bounds = array<i64: 128, 128>}, {transform_indices = @transform_2, window_bounds = array<i64: 32, 128>}]} {
    %c0 = arith.constant 0 : index
    %c0_0 = arith.constant 0 : index
    %0 = vector.load %arg1[%c0, %c0_0] : memref<32x128xbf16, #tpu.memory_space<vmem>>, vector<32x128xbf16>
    %c0_1 = arith.constant 0 : index
    %c0_2 = arith.constant 0 : index
    %1 = vector.load %arg2[%c0_1, %c0_2] : memref<128x128xbf16, #tpu.memory_space<vmem>>, vector<128x128xbf16>
    %cst = arith.constant dense<0.000000e+00> : vector<32x128xf32>
    %2 = tpu.matmul %0, %1, %cst {dimension_numbers = #tpu.dot_dimension_numbers<[1], [0], [0], [1], [0, 0, 1, 1], [], []>} : vector<32x128xbf16>, vector<128x128xbf16>, vector<32x128xf32> -> vector<32x128xf32>
    %c0_3 = arith.constant 0 : index
    %c0_4 = arith.constant 0 : index
    %3 = vector.load %arg3[%c0_3, %c0_4] : memref<32x128xf32, #tpu.memory_space<vmem>>, vector<32x128xf32>
    tpu.vector_store %arg3[%c0_3, %c0_4], %2 {strides = array<i32>} : memref<32x128xf32, #tpu.memory_space<vmem>>, vector<32x128xf32>,
    return
  }
  func.func @transform_0(%arg0: i32) -> (i32, i32) {
    %c0_i32 = arith.constant 0 : i32
    %c0_i32_0 = arith.constant 0 : i32
    return %arg0, %c0_i32 : i32, i32
  }
  func.func @transform_1(%arg0: i32) -> (i32, i32) {
    %c0_i32 = arith.constant 0 : i32
    %c0_i32_0 = arith.constant 0 : i32
    %c0_i32_1 = arith.constant 0 : i32
    return %c0_i32, %c0_i32_0 : i32, i32
  }
  func.func @transform_2(%arg0: i32) -> (i32, i32) {
    %c0_i32 = arith.constant 0 : i32
    %c0_i32_0 = arith.constant 0 : i32
    return %arg0, %c0_i32 : i32, i32
  }
}

</mosaic_0001>

<llo_original>
// kernel: patch_embedding_forward.1
$region0: #{patch_embedding_forward.1}
  #allocation0 [shape = 'u32[]', space=smem, size = 0x4, offset = 0x4, fixed_abs, tag = 'smem constant byte address 0x4 - core index']
  #allocation1 [shape = 'u32[72,128]{1,0:T(1,128)}', space=vmem, size = 0x9000, scoped, tag = 'internal scratch']
  %s0 = inlined_call_operand.vmem [shape: bf16[32,128], index: 0, kind: input, shape index: {}]
  %s1 = inlined_call_operand.vmem [shape: bf16[128,128], index: 1, kind: input, shape index: {}]
  %s2 = inlined_call_operand.hbm [shape: f32[32,128], index: 2, kind: output, shape index: {}]
  %s3 = sld [smem:[#allocation0]]
  $region18: #{patch_embedding_forward.1} parent=0
    _
  %s5 = ssub.s32 1, %s3
  %s6 = scalar_select 0, %s5, %s3
  $region1: #{patch_embedding_forward.1} parent=0
    #allocation2 [shape = 'u8[16384]{0}', space=vmem, size = 0x4000, scoped, tag = 'output window, operand 0, single buffered']
    #allocation3 [shape = 's32[1]{0}', space=sflag, size = 0x4, scoped, tag = 'scoped memory for patch_embedding_forward.1']
    %7 = vsyncpa [#allocation3], 0
    // Predicated region
    $region2: #{patch_embedding_forward.1} parent=1 // pred_check
      _
    $region3: #{patch_embedding_forward.1} parent=1 // pred_check_branch
      %9 = sbr.rel (0) target = $region5
    $region4: #{patch_embedding_forward.1} parent=1 // pred_region
      _
    $region5: #{patch_embedding_forward.1} parent=1 // pred_fallthru
      _
    // Predicated region
    $region6: #{patch_embedding_forward.1} parent=1 // pred_check
      _
    $region7: #{patch_embedding_forward.1} parent=1 // pred_check_branch
      %11 = sbr.rel (0) target = $region9
    $region8: #{patch_embedding_forward.1} parent=1 // pred_region
      _
    $region9: #{patch_embedding_forward.1} parent=1 // pred_fallthru
      _
    %v12 = vld [vmem:[%s0] sm:$0xf]
    %v13 = vld [vmem:[%s0 + $0x4] sm:$0xf]
    %v14 = vld [vmem:[%s0 + $0x8] sm:$0xf]
    %v15 = vld [vmem:[%s0 + $0xc] sm:$0xf]
    %v16 = vld [vmem:[%s1] sm:$0xf]
    %v17 = vld [vmem:[%s1 + $0x4] sm:$0xf]
    %v18 = vld [vmem:[%s1 + $0x8] sm:$0xf]
    %v19 = vld [vmem:[%s1 + $0xc] sm:$0xf]
    %v20 = vld [vmem:[%s1 + $0x10] sm:$0xf]
    %v21 = vld [vmem:[%s1 + $0x14] sm:$0xf]
    %v22 = vld [vmem:[%s1 + $0x18] sm:$0xf]
    %v23 = vld [vmem:[%s1 + $0x1c] sm:$0xf]
    %v24 = vld [vmem:[%s1 + $0x20] sm:$0xf]
    %v25 = vld [vmem:[%s1 + $0x24] sm:$0xf]
    %v26 = vld [vmem:[%s1 + $0x28] sm:$0xf]
    %v27 = vld [vmem:[%s1 + $0x2c] sm:$0xf]
    %v28 = vld [vmem:[%s1 + $0x30] sm:$0xf]
    %v29 = vld [vmem:[%s1 + $0x34] sm:$0xf]
    %v30 = vld [vmem:[%s1 + $0x38] sm:$0xf]
    %v31 = vld [vmem:[%s1 + $0x3c] sm:$0xf]
    %v36 = vunpack.c.l.b16 %v12
    %v37 = vunpack.c.l.b16 %v13
    %v38 = vunpack.c.l.b16 %v14
    %v39 = vunpack.c.l.b16 %v15
    %v40 = vpack.c.b16 %v37, %v36
    %v41 = vpack.c.b16 %v39, %v38
    %v60 = vunpack.c.l.b16 %v16
    %v61 = vunpack.c.l.b16 %v17
    %v62 = vunpack.c.l.b16 %v18
    %v63 = vunpack.c.l.b16 %v19
    %v64 = vunpack.c.l.b16 %v20
    %v65 = vunpack.c.l.b16 %v21
    %v66 = vunpack.c.l.b16 %v22
    %v67 = vunpack.c.l.b16 %v23
    %v68 = vunpack.c.l.b16 %v24
    %v69 = vunpack.c.l.b16 %v25
    %v70 = vunpack.c.l.b16 %v26
    %v71 = vunpack.c.l.b16 %v27
    %v72 = vunpack.c.l.b16 %v28
    %v73 = vunpack.c.l.b16 %v29
    %v74 = vunpack.c.l.b16 %v30
    %v75 = vunpack.c.l.b16 %v31
    %v76 = vpack.c.b16 %v61, %v60
    %v77 = vpack.c.b16 %v63, %v62
    %v78 = vpack.c.b16 %v65, %v64
    %v79 = vpack.c.b16 %v67, %v66
    %v80 = vpack.c.b16 %v69, %v68
    %v81 = vpack.c.b16 %v71, %v70
    %v82 = vpack.c.b16 %v73, %v72
    %v83 = vpack.c.b16 %v75, %v74
    %92 = vmatpush.bf16.msra.mxu0 %v83
    %93 = vmatpush.bf16.msra.mxu0 %v82
    %94 = vmatpush.bf16.msra.mxu0 %v81
    %95 = vmatpush.bf16.msra.mxu0 %v80
    %96 = vmatpush.bf16.msra.mxu0 %v79
    %97 = vmatpush.bf16.msra.mxu0 %v78
    %98 = vmatpush.bf16.msra.mxu0 %v77
    %99 = vmatpush.bf16.msra.mxu0 %v76
    %100 = vmatmul.bf16.gmra.mxu0 %v40
    %v101 = vpop.f32.mrf.mxu0
    %v102 = vadd.f32 0.0, %v101
    %v103 = vpop.f32.mrf.mxu0
    %v104 = vadd.f32 0.0, %v103
    %105 = vmatmul.bf16.gmra.mxu0 %v41
    %v106 = vpop.f32.mrf.mxu0
    %v107 = vadd.f32 0.0, %v106
    %v108 = vpop.f32.mrf.mxu0
    %v109 = vadd.f32 0.0, %v108
    %110 = vdwg.mxu0
    %111 = vst [vmem:[#allocation2] sm:$0xff] %v102
    %112 = vst [vmem:[#allocation2 + $0x8] sm:$0xff] %v104
    %113 = vst [vmem:[#allocation2 + $0x10] sm:$0xff] %v107
    %114 = vst [vmem:[#allocation2 + $0x18] sm:$0xff] %v109
    // Predicated region
    $region10: #{patch_embedding_forward.1} parent=1 // pred_check
      _
    $region11: #{patch_embedding_forward.1} parent=1 // pred_check_branch
      %116 = sbr.rel (0) target = $region13
    $region12: #{patch_embedding_forward.1} parent=1 // pred_region
      %118 = vsyncadd [#allocation3], 0
      %s119 = sshll.u32 [#allocation2], 4
      %s120 = int_to_ptr.vmem [resolvable:$true] %s119
      %s121 = sshll.u32 %s2, 4
      %s122 = int_to_ptr.hbm [resolvable:$true] %s121
      %127 = dma.vmem_to_hbm [thread:$0]  %s120, 512, %s122, [#allocation3], 128, 128, 8
    $region13: #{patch_embedding_forward.1} parent=1 // pred_fallthru
      _
    // Predicated region
    $region14: #{patch_embedding_forward.1} parent=1 // pred_check
      _
    $region15: #{patch_embedding_forward.1} parent=1 // pred_check_branch
      %129 = sbr.rel (0) target = $region17
    $region16: #{patch_embedding_forward.1} parent=1 // pred_region
      %131 = dma.done [#allocation3], 512
    $region17: #{patch_embedding_forward.1} parent=1 // pred_fallthru
      _
    %132 = vsyncpa [#allocation3], 1

</llo_original>
